<compile_context>
chip_gen: v5e
topology: v5e:2x2
jax: 0.10.0
libtpu: 0.0.40
codegen_flags: <defaults>
</compile_context>

<pallas_src>
import math

import jax
import jax.numpy as jnp
from jax.experimental import pallas as pl
from jax.experimental.pallas import tpu as pltpu


def _round_up(n, m):
    return (n + m - 1) // m * m


# ---------------------------------------------------------------------------
# Kernels
# ---------------------------------------------------------------------------
def _lora_qkv_kernel(x_ref, wq_ref, wk_ref, wv_ref, bq_ref, bk_ref, bv_ref,
                     a_ref, lbq_ref, lbv_ref, q_ref, k_ref, v_ref):
    """One token tile: qkv GEMMs + fused rank-2r LoRA update on q and v.

    x_ref   : [TM, C]   token tile (input dtype; cast in-kernel)
    wq/wk/wv: [C, C]    per-slab transposed dense weights (compute dtype)
    bq/bk/bv: [1, C]    per-slab bias (f32)
    a_ref   : [C, 2r]   [A_q^T | A_v^T]
    lbq_ref : [2r, C]   rows [:r] = B_q^T, rows [r:] = 0
    lbv_ref : [2r, C]   rows [:r] = 0,     rows [r:] = B_v^T
    q/k/v   : [TM, C]   outputs
    """
    x = x_ref[...].astype(wq_ref.dtype)
    # Fused LoRA "down" projection: [TM, C] @ [C, 2r] -> [TM, 2r].
    lo = jnp.dot(x, a_ref[...], preferred_element_type=jnp.float32)
    lo = lo.astype(lbq_ref.dtype)

    q = jnp.dot(x, wq_ref[...], preferred_element_type=jnp.float32) + bq_ref[...]
    q = q + jnp.dot(lo, lbq_ref[...], preferred_element_type=jnp.float32)
    q_ref[...] = q.astype(q_ref.dtype)

    k = jnp.dot(x, wk_ref[...], preferred_element_type=jnp.float32) + bk_ref[...]
    k_ref[...] = k.astype(k_ref.dtype)

    v = jnp.dot(x, wv_ref[...], preferred_element_type=jnp.float32) + bv_ref[...]
    v = v + jnp.dot(lo, lbv_ref[...], preferred_element_type=jnp.float32)
    v_ref[...] = v.astype(v_ref.dtype)


def _dense_qkv_kernel(x_ref, wq_ref, wk_ref, wv_ref, bq_ref, bk_ref, bv_ref,
                      q_ref, k_ref, v_ref):
    """Merged-LoRA (inference) path: plain per-slab GEMM + bias."""
    x = x_ref[...].astype(wq_ref.dtype)
    q_ref[...] = (jnp.dot(x, wq_ref[...], preferred_element_type=jnp.float32)
                  + bq_ref[...]).astype(q_ref.dtype)
    k_ref[...] = (jnp.dot(x, wk_ref[...], preferred_element_type=jnp.float32)
                  + bk_ref[...]).astype(k_ref.dtype)
    v_ref[...] = (jnp.dot(x, wv_ref[...], preferred_element_type=jnp.float32)
                  + bv_ref[...]).astype(v_ref.dtype)


# ---------------------------------------------------------------------------
# One-time parameter preparation (hoisted out of the hot path)
# ---------------------------------------------------------------------------
def prepare_lora_qkv_params(w_qkv, b_qkv, w_a_q, w_b_q, w_a_v, w_b_v, *,
                            compute_dtype=jnp.bfloat16, merge_lora=False):
    """Transpose / split / cast the qkv + LoRA weights into kernel layouts.

    w_qkv : [3C, C] (nn.Linear [out, in]); b_qkv : [3C] or None
    w_a_q, w_a_v : [r, C];  w_b_q, w_b_v : [C, r]
    """
    three_c, c = w_qkv.shape
    assert three_c == 3 * c
    r = w_a_q.shape[0]
    if b_qkv is None:
        b_qkv = jnp.zeros((three_c,), jnp.float32)

    hi = jax.lax.Precision.HIGHEST
    wt = jnp.transpose(w_qkv).astype(jnp.float32)        # [C, 3C]
    w_q, w_k, w_v = wt[:, :c], wt[:, c:2 * c], wt[:, 2 * c:]

    bias = b_qkv.astype(jnp.float32).reshape(1, three_c)
    b_q, b_k, b_v = bias[:, :c], bias[:, c:2 * c], bias[:, 2 * c:]

    a_q_t = jnp.transpose(w_a_q).astype(jnp.float32)     # [C, r]
    a_v_t = jnp.transpose(w_a_v).astype(jnp.float32)
    b_q_t = jnp.transpose(w_b_q).astype(jnp.float32)     # [r, C]
    b_v_t = jnp.transpose(w_b_v).astype(jnp.float32)

    params = {"c": c, "r": r,
              "b_q": b_q, "b_k": b_k, "b_v": b_v}
    if merge_lora:
        # Inference-only standard LoRA merge: fold A@B into the dense weights.
        params["w_q"] = (w_q + jnp.dot(a_q_t, b_q_t, precision=hi)).astype(compute_dtype)
        params["w_k"] = w_k.astype(compute_dtype)
        params["w_v"] = (w_v + jnp.dot(a_v_t, b_v_t, precision=hi)).astype(compute_dtype)
    else:
        params["w_q"] = w_q.astype(compute_dtype)
        params["w_k"] = w_k.astype(compute_dtype)
        params["w_v"] = w_v.astype(compute_dtype)
        # Fused "down" projection; zero-ROW-extended "up" projections so the
        # kernel never lane-slices the rank bottleneck and never computes the
        # k output columns from the LoRA path.
        params["a_cat"] = jnp.concatenate([a_q_t, a_v_t], axis=1).astype(compute_dtype)
        lbq = jnp.zeros((2 * r, c), jnp.float32).at[:r].set(b_q_t)
        lbv = jnp.zeros((2 * r, c), jnp.float32).at[r:].set(b_v_t)
        params["lora_b_q"] = lbq.astype(compute_dtype)
        params["lora_b_v"] = lbv.astype(compute_dtype)
    return params


# ---------------------------------------------------------------------------
# Forward
# ---------------------------------------------------------------------------
def lora_qkv_forward(x, params, *, tm=256, out_dtype=None,
                     vmem_limit_bytes=48 * 1024 * 1024, return_concat=False):
    """Pallas-fused _LoRA_qkv.forward.

    x : [B, H, W, C] channels-last token grid.
    Returns (q, k, v), each [B, H, W, C] (SAM2 attention splits qkv anyway);
    pass return_concat=True for the PyTorch-identical [B, H, W, 3C] layout
    (costs one extra HBM copy -- avoid in the hot path).
    tm: token-tile rows; 256 is a good default (drop to 128 on v7x late Hiera
    stages so both TensorCores stay busy).
    """
    b, h, w, c = x.shape
    assert c == params["c"]
    compute_dtype = params["w_q"].dtype
    if out_dtype is None:
        out_dtype = compute_dtype

    m = b * h * w
    x2d = x.reshape(m, c)                         # free reshape: no cast/pad pass
    tm_eff = max(8, min(tm, _round_up(m, 32)))    # small problems -> one tile
    grid = (pl.cdiv(m, tm_eff),)                  # ragged last tile is masked

    tok_spec = pl.BlockSpec((tm_eff, c), lambda i: (i, 0))

    def const_spec(arr):
        # Constant block index: the DMA is elided after the first grid step.
        return pl.BlockSpec(arr.shape, lambda i: (0, 0))

    in_arrays = [x2d, params["w_q"], params["w_k"], params["w_v"],
                 params["b_q"], params["b_k"], params["b_v"]]
    if "a_cat" in params:
        kernel = _lora_qkv_kernel
        in_arrays += [params["a_cat"], params["lora_b_q"], params["lora_b_v"]]
    else:
        kernel = _dense_qkv_kernel
    in_specs = [tok_spec] + [const_spec(a) for a in in_arrays[1:]]

    out_spec = pl.BlockSpec((tm_eff, c), lambda i: (i, 0))
    q2d, k2d, v2d = pl.pallas_call(
        kernel,
        out_shape=tuple(jax.ShapeDtypeStruct((m, c), out_dtype) for _ in range(3)),
        grid_spec=pltpu.PrefetchScalarGridSpec(
            num_scalar_prefetch=0,
            grid=grid,
            in_specs=in_specs,
            out_specs=(out_spec, out_spec, out_spec),
        ),
        compiler_params=pltpu.CompilerParams(
            dimension_semantics=("parallel",),
            vmem_limit_bytes=vmem_limit_bytes,
        ),
    )(*in_arrays)

    q = q2d.reshape(b, h, w, c)
    k = k2d.reshape(b, h, w, c)
    v = v2d.reshape(b, h, w, c)
    if return_concat:
        return jnp.concatenate([q, k, v], axis=-1)
    return q, k, v


# ---------------------------------------------------------------------------
# Plain-JAX reference (mirrors the PyTorch _LoRA_qkv forward)
# ---------------------------------------------------------------------------
def _reference(x, w_qkv, b_qkv, w_a_q, w_b_q, w_a_v, w_b_v):
    hi = jax.lax.Precision.HIGHEST
    xf = x.astype(jnp.float32)
    c = x.shape[-1]
    qkv = jnp.einsum("bhwc,oc->bhwo", xf, w_qkv.astype(jnp.float32),
                     precision=hi) + b_qkv
    new_q = jnp.einsum("bhwr,or->bhwo",
                       jnp.einsum("bhwc,rc->bhwr", xf, w_a_q.astype(jnp.float32),
                                  precision=hi),
                       w_b_q.astype(jnp.float32), precision=hi)
    new_v = jnp.einsum("bhwr,or->bhwo",
                       jnp.einsum("bhwc,rc->bhwr", xf, w_a_v.astype(jnp.float32),
                                  precision=hi),
                       w_b_v.astype(jnp.float32), precision=hi)
    qkv = qkv.at[:, :, :, :c].add(new_q)
    qkv = qkv.at[:, :, :, -c:].add(new_v)
    return qkv


if __name__ == "__main__":
    # Small shapes consistent with a SAM2 Hiera attention-block input.
    B, H, W, C = 2, 8, 8, 32
    r = 4

    key = jax.random.PRNGKey(0)
    kx, kw, kb, kaq, kav, kbq, kbv = jax.random.split(key, 7)

    x = jax.random.normal(kx, (B, H, W, C), dtype=jnp.float32)

    bound = 1.0 / math.sqrt(C)
    w_qkv = jax.random.uniform(kw, (3 * C, C), minval=-bound, maxval=bound)
    b_qkv = jax.random.uniform(kb, (3 * C,), minval=-bound, maxval=bound)
    # LoRA A init per reset_parameters (kaiming_uniform a=sqrt(5)); B zeroed.
    w_a_q = jax.random.uniform(kaq, (r, C), minval=-bound, maxval=bound)
    w_a_v = jax.random.uniform(kav, (r, C), minval=-bound, maxval=bound)
    w_b_q0 = jnp.zeros((C, r), jnp.float32)
    w_b_v0 = jnp.zeros((C, r), jnp.float32)
    # Non-zero B ("post-training") so the LoRA path is actually exercised.
    w_b_q1 = 0.05 * jax.random.normal(kbq, (C, r), dtype=jnp.float32)
    w_b_v1 = 0.05 * jax.random.normal(kbv, (C, r), dtype=jnp.float32)

    def check(params, wbq, wbv, atol, rtol, tag):
        q, k, v = lora_qkv_forward(x, params)
        qkv = jnp.concatenate([q, k, v], axis=-1).astype(jnp.float32)
        jax.block_until_ready(qkv)
        ref = _reference(x, w_qkv, b_qkv, w_a_q, wbq, w_a_v, wbv)
        assert qkv.shape == (B, H, W, 3 * C), qkv.shape
        assert jnp.allclose(qkv, ref, atol=atol, rtol=rtol), f"mismatch ({tag})"

    # 1) Module-faithful init (B = 0), f32 operands, tight tolerance.
    p = prepare_lora_qkv_params(w_qkv, b_qkv, w_a_q, w_b_q0, w_a_v, w_b_v0,
                                compute_dtype=jnp.float32)
    check(p, w_b_q0, w_b_v0, 1e-4, 1e-4, "B=0, f32")

    # 2) Non-zero B, f32 operands (exercises the fused LoRA path).
    p = prepare_lora_qkv_params(w_qkv, b_qkv, w_a_q, w_b_q1, w_a_v, w_b_v1,
                                compute_dtype=jnp.float32)
    check(p, w_b_q1, w_b_v1, 1e-4, 1e-4, "LoRA, f32")

    # 3) bf16 MXU operands + bf16 output, f32 accumulation (perf default).
    p = prepare_lora_qkv_params(w_qkv, b_qkv, w_a_q, w_b_q1, w_a_v, w_b_v1)
    check(p, w_b_q1, w_b_v1, 5e-2, 5e-2, "LoRA, bf16")

    # 4) Inference-only merged-LoRA path (dense per-slab GEMM kernel).
    p = prepare_lora_qkv_params(w_qkv, b_qkv, w_a_q, w_b_q1, w_a_v, w_b_v1,
                                compute_dtype=jnp.float32, merge_lora=True)
    check(p, w_b_q1, w_b_v1, 1e-4, 1e-4, "merged")

    # 5) PyTorch-identical concatenated [B,H,W,3C] convenience return.
    p = prepare_lora_qkv_params(w_qkv, b_qkv, w_a_q, w_b_q1, w_a_v, w_b_v1,
                                compute_dtype=jnp.float32)
    qkv = jax.block_until_ready(lora_qkv_forward(x, p, return_concat=True))
    ref = _reference(x, w_qkv, b_qkv, w_a_q, w_b_q1, w_a_v, w_b_v1)
    assert jnp.allclose(qkv, ref, atol=1e-4, rtol=1e-4), "mismatch (concat)"

    # TODO(synk): the rest of LoRA_Sam.forward (forward_image,
    # _prepare_backbone_features, track_step, mask decoder) depends on the
    # full SAM2 model and is out of scope for a single Pallas kernel.
    print("KERNEL_OK")
</pallas_src>

<mosaic_0001>
module attributes {stable_mosaic.version = 11 : i64} {
  func.func @_lora_qkv_kernel(%arg0: i32, %arg1: memref<128x32xf32, #tpu.memory_space<vmem>>, %arg2: memref<32x32xf32, #tpu.memory_space<vmem>>, %arg3: memref<32x32xf32, #tpu.memory_space<vmem>>, %arg4: memref<32x32xf32, #tpu.memory_space<vmem>>, %arg5: memref<1x32xf32, #tpu.memory_space<vmem>>, %arg6: memref<1x32xf32, #tpu.memory_space<vmem>>, %arg7: memref<1x32xf32, #tpu.memory_space<vmem>>, %arg8: memref<32x8xf32, #tpu.memory_space<vmem>>, %arg9: memref<8x32xf32, #tpu.memory_space<vmem>>, %arg10: memref<8x32xf32, #tpu.memory_space<vmem>>, %arg11: memref<128x32xf32, #tpu.memory_space<vmem>>, %arg12: memref<128x32xf32, #tpu.memory_space<vmem>>, %arg13: memref<128x32xf32, #tpu.memory_space<vmem>>) attributes {dimension_semantics = [#tpu.dimension_semantics<parallel>], iteration_bounds = array<i64: 1>, scalar_prefetch = 0 : i64, scratch_operands = 0 : i64, tpu.core_type = #tpu.core_type<tc>, window_params = [{transform_indices = @transform_0, window_bounds = array<i64: 128, 32>}, {pipeline_mode = #tpu.pipeline_mode<synchronous>, transform_indices = @transform_1, window_bounds = array<i64: 32, 32>}, {pipeline_mode = #tpu.pipeline_mode<synchronous>, transform_indices = @transform_2, window_bounds = array<i64: 32, 32>}, {pipeline_mode = #tpu.pipeline_mode<synchronous>, transform_indices = @transform_3, window_bounds = array<i64: 32, 32>}, {pipeline_mode = #tpu.pipeline_mode<synchronous>, transform_indices = @transform_4, window_bounds = array<i64: 1, 32>}, {pipeline_mode = #tpu.pipeline_mode<synchronous>, transform_indices = @transform_5, window_bounds = array<i64: 1, 32>}, {pipeline_mode = #tpu.pipeline_mode<synchronous>, transform_indices = @transform_6, window_bounds = array<i64: 1, 32>}, {pipeline_mode = #tpu.pipeline_mode<synchronous>, transform_indices = @transform_7, window_bounds = array<i64: 32, 8>}, {pipeline_mode = #tpu.pipeline_mode<synchronous>, transform_indices = @transform_8, window_bounds = array<i64: 8, 32>}, {pipeline_mode = #tpu.pipeline_mode<synchronous>, transform_indices = @transform_9, window_bounds = array<i64: 8, 32>}, {transform_indices = @transform_10, window_bounds = array<i64: 128, 32>}, {transform_indices = @transform_11, window_bounds = array<i64: 128, 32>}, {transform_indices = @transform_12, window_bounds = array<i64: 128, 32>}]} {
    %c0 = arith.constant 0 : index
    %c0_0 = arith.constant 0 : index
    %0 = vector.load %arg1[%c0, %c0_0] : memref<128x32xf32, #tpu.memory_space<vmem>>, vector<128x32xf32>
    %c0_1 = arith.constant 0 : index
    %c0_2 = arith.constant 0 : index
    %1 = vector.load %arg8[%c0_1, %c0_2] : memref<32x8xf32, #tpu.memory_space<vmem>>, vector<32x8xf32>
    %cst = arith.constant dense<0.000000e+00> : vector<128x8xf32>
    %2 = tpu.matmul %0, %1, %cst {dimension_numbers = #tpu.dot_dimension_numbers<[1], [0], [0], [1], [0, 0, 1, 1], [], []>} : vector<128x32xf32>, vector<32x8xf32>, vector<128x8xf32> -> vector<128x8xf32>
    %c0_3 = arith.constant 0 : index
    %c0_4 = arith.constant 0 : index
    %3 = vector.load %arg2[%c0_3, %c0_4] : memref<32x32xf32, #tpu.memory_space<vmem>>, vector<32x32xf32>
    %cst_5 = arith.constant dense<0.000000e+00> : vector<128x32xf32>
    %4 = tpu.matmul %0, %3, %cst_5 {dimension_numbers = #tpu.dot_dimension_numbers<[1], [0], [0], [1], [0, 0, 1, 1], [], []>} : vector<128x32xf32>, vector<32x32xf32>, vector<128x32xf32> -> vector<128x32xf32>
    %c0_6 = arith.constant 0 : index
    %c0_7 = arith.constant 0 : index
    %5 = vector.load %arg5[%c0_6, %c0_7] : memref<1x32xf32, #tpu.memory_space<vmem>>, vector<1x32xf32>
    %6 = vector.broadcast %5 : vector<1x32xf32> to vector<128x32xf32>
    %7 = arith.addf %4, %6 : vector<128x32xf32>
    %c0_8 = arith.constant 0 : index
    %c0_9 = arith.constant 0 : index
    %8 = vector.load %arg9[%c0_8, %c0_9] : memref<8x32xf32, #tpu.memory_space<vmem>>, vector<8x32xf32>
    %cst_10 = arith.constant dense<0.000000e+00> : vector<128x32xf32>
    %9 = tpu.matmul %2, %8, %cst_10 {dimension_numbers = #tpu.dot_dimension_numbers<[1], [0], [0], [1], [0, 0, 1, 1], [], []>} : vector<128x8xf32>, vector<8x32xf32>, vector<128x32xf32> -> vector<128x32xf32>
    %10 = arith.addf %7, %9 : vector<128x32xf32>
    %c0_11 = arith.constant 0 : index
    %c0_12 = arith.constant 0 : index
    %11 = vector.load %arg11[%c0_11, %c0_12] : memref<128x32xf32, #tpu.memory_space<vmem>>, vector<128x32xf32>
    tpu.vector_store %arg11[%c0_11, %c0_12], %10 {strides = array<i32>} : memref<128x32xf32, #tpu.memory_space<vmem>>, vector<128x32xf32>,
    %c0_13 = arith.constant 0 : index
    %c0_14 = arith.constant 0 : index
    %12 = vector.load %arg3[%c0_13, %c0_14] : memref<32x32xf32, #tpu.memory_space<vmem>>, vector<32x32xf32>
    %cst_15 = arith.constant dense<0.000000e+00> : vector<128x32xf32>
    %13 = tpu.matmul %0, %12, %cst_15 {dimension_numbers = #tpu.dot_dimension_numbers<[1], [0], [0], [1], [0, 0, 1, 1], [], []>} : vector<128x32xf32>, vector<32x32xf32>, vector<128x32xf32> -> vector<128x32xf32>
    %c0_16 = arith.constant 0 : index
    %c0_17 = arith.constant 0 : index
    %14 = vector.load %arg6[%c0_16, %c0_17] : memref<1x32xf32, #tpu.memory_space<vmem>>, vector<1x32xf32>
    %15 = vector.broadcast %14 : vector<1x32xf32> to vector<128x32xf32>
    %16 = arith.addf %13, %15 : vector<128x32xf32>
    %c0_18 = arith.constant 0 : index
    %c0_19 = arith.constant 0 : index
    %17 = vector.load %arg12[%c0_18, %c0_19] : memref<128x32xf32, #tpu.memory_space<vmem>>, vector<128x32xf32>
    tpu.vector_store %arg12[%c0_18, %c0_19], %16 {strides = array<i32>} : memref<128x32xf32, #tpu.memory_space<vmem>>, vector<128x32xf32>,
    %c0_20 = arith.constant 0 : index
    %c0_21 = arith.constant 0 : index
    %18 = vector.load %arg4[%c0_20, %c0_21] : memref<32x32xf32, #tpu.memory_space<vmem>>, vector<32x32xf32>
    %cst_22 = arith.constant dense<0.000000e+00> : vector<128x32xf32>
    %19 = tpu.matmul %0, %18, %cst_22 {dimension_numbers = #tpu.dot_dimension_numbers<[1], [0], [0], [1], [0, 0, 1, 1], [], []>} : vector<128x32xf32>, vector<32x32xf32>, vector<128x32xf32> -> vector<128x32xf32>
    %c0_23 = arith.constant 0 : index
    %c0_24 = arith.constant 0 : index
    %20 = vector.load %arg7[%c0_23, %c0_24] : memref<1x32xf32, #tpu.memory_space<vmem>>, vector<1x32xf32>
    %21 = vector.broadcast %20 : vector<1x32xf32> to vector<128x32xf32>
    %22 = arith.addf %19, %21 : vector<128x32xf32>
    %c0_25 = arith.constant 0 : index
    %c0_26 = arith.constant 0 : index
    %23 = vector.load %arg10[%c0_25, %c0_26] : memref<8x32xf32, #tpu.memory_space<vmem>>, vector<8x32xf32>
    %cst_27 = arith.constant dense<0.000000e+00> : vector<128x32xf32>
    %24 = tpu.matmul %2, %23, %cst_27 {dimension_numbers = #tpu.dot_dimension_numbers<[1], [0], [0], [1], [0, 0, 1, 1], [], []>} : vector<128x8xf32>, vector<8x32xf32>, vector<128x32xf32> -> vector<128x32xf32>
    %25 = arith.addf %22, %24 : vector<128x32xf32>
    %c0_28 = arith.constant 0 : index
    %c0_29 = arith.constant 0 : index
    %26 = vector.load %arg13[%c0_28, %c0_29] : memref<128x32xf32, #tpu.memory_space<vmem>>, vector<128x32xf32>
    tpu.vector_store %arg13[%c0_28, %c0_29], %25 {strides = array<i32>} : memref<128x32xf32, #tpu.memory_space<vmem>>, vector<128x32xf32>,
    return
  }
  func.func @transform_0(%arg0: i32) -> (i32, i32) {
    %c0_i32 = arith.constant 0 : i32
    %c0_i32_0 = arith.constant 0 : i32
    return %arg0, %c0_i32 : i32, i32
  }
  func.func @transform_1(%arg0: i32) -> (i32, i32) {
    %c0_i32 = arith.constant 0 : i32
    %c0_i32_0 = arith.constant 0 : i32
    %c0_i32_1 = arith.constant 0 : i32
    return %c0_i32, %c0_i32_0 : i32, i32
  }
  func.func @transform_2(%arg0: i32) -> (i32, i32) {
    %c0_i32 = arith.constant 0 : i32
    %c0_i32_0 = arith.constant 0 : i32
    %c0_i32_1 = arith.constant 0 : i32
    return %c0_i32, %c0_i32_0 : i32, i32
  }
  func.func @transform_3(%arg0: i32) -> (i32, i32) {
    %c0_i32 = arith.constant 0 : i32
    %c0_i32_0 = arith.constant 0 : i32
    %c0_i32_1 = arith.constant 0 : i32
    return %c0_i32, %c0_i32_0 : i32, i32
  }
  func.func @transform_4(%arg0: i32) -> (i32, i32) {
    %c0_i32 = arith.constant 0 : i32
    %c0_i32_0 = arith.constant 0 : i32
    %c0_i32_1 = arith.constant 0 : i32
    return %c0_i32, %c0_i32_0 : i32, i32
  }
  func.func @transform_5(%arg0: i32) -> (i32, i32) {
    %c0_i32 = arith.constant 0 : i32
    %c0_i32_0 = arith.constant 0 : i32
    %c0_i32_1 = arith.constant 0 : i32
    return %c0_i32, %c0_i32_0 : i32, i32
  }
  func.func @transform_6(%arg0: i32) -> (i32, i32) {
    %c0_i32 = arith.constant 0 : i32
    %c0_i32_0 = arith.constant 0 : i32
    %c0_i32_1 = arith.constant 0 : i32
    return %c0_i32, %c0_i32_0 : i32, i32
  }
  func.func @transform_7(%arg0: i32) -> (i32, i32) {
    %c0_i32 = arith.constant 0 : i32
    %c0_i32_0 = arith.constant 0 : i32
    %c0_i32_1 = arith.constant 0 : i32
    return %c0_i32, %c0_i32_0 : i32, i32
  }
  func.func @transform_8(%arg0: i32) -> (i32, i32) {
    %c0_i32 = arith.constant 0 : i32
    %c0_i32_0 = arith.constant 0 : i32
    %c0_i32_1 = arith.constant 0 : i32
    return %c0_i32, %c0_i32_0 : i32, i32
  }
  func.func @transform_9(%arg0: i32) -> (i32, i32) {
    %c0_i32 = arith.constant 0 : i32
    %c0_i32_0 = arith.constant 0 : i32
    %c0_i32_1 = arith.constant 0 : i32
    return %c0_i32, %c0_i32_0 : i32, i32
  }
  func.func @transform_10(%arg0: i32) -> (i32, i32) {
    %c0_i32 = arith.constant 0 : i32
    %c0_i32_0 = arith.constant 0 : i32
    return %arg0, %c0_i32 : i32, i32
  }
  func.func @transform_11(%arg0: i32) -> (i32, i32) {
    %c0_i32 = arith.constant 0 : i32
    %c0_i32_0 = arith.constant 0 : i32
    return %arg0, %c0_i32 : i32, i32
  }
  func.func @transform_12(%arg0: i32) -> (i32, i32) {
    %c0_i32 = arith.constant 0 : i32
    %c0_i32_0 = arith.constant 0 : i32
    return %arg0, %c0_i32 : i32, i32
  }
}

</mosaic_0001>

<llo_original>
// kernel: tpu_custom_call.1
$region0: #{tpu_custom_call.1}
  #allocation0 [shape = 'u32[]', space=smem, size = 0x4, offset = 0x4, fixed_abs, tag = 'smem constant byte address 0x4 - core index']
  #allocation1 [shape = 'u32[72,128]{1,0:T(1,128)}', space=vmem, size = 0x9000, scoped, tag = 'internal scratch']
  %s0 = inlined_call_operand.vmem [shape: f32[128,32], index: 0, kind: input, shape index: {}]
  %s1 = inlined_call_operand.vmem [shape: f32[32,32], index: 1, kind: input, shape index: {}]
  %s2 = inlined_call_operand.vmem [shape: f32[32,32], index: 2, kind: input, shape index: {}]
  %s3 = inlined_call_operand.vmem [shape: f32[32,32], index: 3, kind: input, shape index: {}]
  %s4 = inlined_call_operand.vmem [shape: f32[1,32], index: 4, kind: input, shape index: {}]
  %s5 = inlined_call_operand.vmem [shape: f32[1,32], index: 5, kind: input, shape index: {}]
  %s6 = inlined_call_operand.vmem [shape: f32[1,32], index: 6, kind: input, shape index: {}]
  %s7 = inlined_call_operand.vmem [shape: f32[32,8], index: 7, kind: input, shape index: {}]
  %s8 = inlined_call_operand.vmem [shape: f32[8,32], index: 8, kind: input, shape index: {}]
  %s9 = inlined_call_operand.vmem [shape: f32[8,32], index: 9, kind: input, shape index: {}]
  %s10 = inlined_call_operand.vmem [shape: f32[128,32], index: 10, kind: output, shape index: {0}]
  %s11 = inlined_call_operand.vmem [shape: f32[128,32], index: 11, kind: output, shape index: {1}]
  %s12 = inlined_call_operand.vmem [shape: f32[128,32], index: 12, kind: output, shape index: {2}]
  %13 = xla_tuple %s10, %s11, %s12
  %s14 = sld [smem:[#allocation0]]
  $region66: #{tpu_custom_call.1} parent=0
    _
  %s16 = ssub.s32 1, %s14
  %s17 = scalar_select 0, %s16, %s14
  // Predicated region
  $region2: #{tpu_custom_call.1} parent=0 // pred_check
    _
  $region3: #{tpu_custom_call.1} parent=0 // pred_check_branch
    %19 = sbr.rel (0) target = $region5
  $region4: #{tpu_custom_call.1} parent=0 // pred_region
    _
  $region5: #{tpu_custom_call.1} parent=0 // pred_fallthru
    _
  // Predicated region
  $region6: #{tpu_custom_call.1} parent=0 // pred_check
    _
  $region7: #{tpu_custom_call.1} parent=0 // pred_check_branch
    %21 = sbr.rel (0) target = $region9
  $region8: #{tpu_custom_call.1} parent=0 // pred_region
    _
  $region9: #{tpu_custom_call.1} parent=0 // pred_fallthru
    _
  // Predicated region
  $region10: #{tpu_custom_call.1} parent=0 // pred_check
    _
  $region11: #{tpu_custom_call.1} parent=0 // pred_check_branch
    %23 = sbr.rel (0) target = $region13
  $region12: #{tpu_custom_call.1} parent=0 // pred_region
    _
  $region13: #{tpu_custom_call.1} parent=0 // pred_fallthru
    _
  // Predicated region
  $region14: #{tpu_custom_call.1} parent=0 // pred_check
    _
  $region15: #{tpu_custom_call.1} parent=0 // pred_check_branch
    %25 = sbr.rel (0) target = $region17
  $region16: #{tpu_custom_call.1} parent=0 // pred_region
    _
  $region17: #{tpu_custom_call.1} parent=0 // pred_fallthru
    _
  // Predicated region
  $region18: #{tpu_custom_call.1} parent=0 // pred_check
    _
  $region19: #{tpu_custom_call.1} parent=0 // pred_check_branch
    %27 = sbr.rel (0) target = $region21
  $region20: #{tpu_custom_call.1} parent=0 // pred_region
    _
  $region21: #{tpu_custom_call.1} parent=0 // pred_fallthru
    _
  // Predicated region
  $region22: #{tpu_custom_call.1} parent=0 // pred_check
    _
  $region23: #{tpu_custom_call.1} parent=0 // pred_check_branch
    %29 = sbr.rel (0) target = $region25
  $region24: #{tpu_custom_call.1} parent=0 // pred_region
    _
  $region25: #{tpu_custom_call.1} parent=0 // pred_fallthru
    _
  // Predicated region
  $region26: #{tpu_custom_call.1} parent=0 // pred_check
    _
  $region27: #{tpu_custom_call.1} parent=0 // pred_check_branch
    %31 = sbr.rel (0) target = $region29
  $region28: #{tpu_custom_call.1} parent=0 // pred_region
    _
  $region29: #{tpu_custom_call.1} parent=0 // pred_fallthru
    _
  // Predicated region
  $region30: #{tpu_custom_call.1} parent=0 // pred_check
    _
  $region31: #{tpu_custom_call.1} parent=0 // pred_check_branch
    %33 = sbr.rel (0) target = $region33
  $region32: #{tpu_custom_call.1} parent=0 // pred_region
    _
  $region33: #{tpu_custom_call.1} parent=0 // pred_fallthru
    _
  // Predicated region
  $region34: #{tpu_custom_call.1} parent=0 // pred_check
    _
  $region35: #{tpu_custom_call.1} parent=0 // pred_check_branch
    %35 = sbr.rel (0) target = $region37
  $region36: #{tpu_custom_call.1} parent=0 // pred_region
    _
  $region37: #{tpu_custom_call.1} parent=0 // pred_fallthru
    _
  // Predicated region
  $region38: #{tpu_custom_call.1} parent=0 // pred_check
    _
  $region39: #{tpu_custom_call.1} parent=0 // pred_check_branch
    %37 = sbr.rel (0) target = $region41
  $region40: #{tpu_custom_call.1} parent=0 // pred_region
    _
  $region41: #{tpu_custom_call.1} parent=0 // pred_fallthru
    _
  %v38 = vld [vmem:[%s0] sm:$0xff]
  %v39 = vld [vmem:[%s0 + $0x8] sm:$0xff]
  %v40 = vld [vmem:[%s0 + $0x10] sm:$0xff]
  %v41 = vld [vmem:[%s0 + $0x18] sm:$0xff]
  %v42 = vld [vmem:[%s0 + $0x20] sm:$0xff]
  %v43 = vld [vmem:[%s0 + $0x28] sm:$0xff]
  %v44 = vld [vmem:[%s0 + $0x30] sm:$0xff]
  %v45 = vld [vmem:[%s0 + $0x38] sm:$0xff]
  %v46 = vld [vmem:[%s0 + $0x40] sm:$0xff]
  %v47 = vld [vmem:[%s0 + $0x48] sm:$0xff]
  %v48 = vld [vmem:[%s0 + $0x50] sm:$0xff]
  %v49 = vld [vmem:[%s0 + $0x58] sm:$0xff]
  %v50 = vld [vmem:[%s0 + $0x60] sm:$0xff]
  %v51 = vld [vmem:[%s0 + $0x68] sm:$0xff]
  %v52 = vld [vmem:[%s0 + $0x70] sm:$0xff]
  %v53 = vld [vmem:[%s0 + $0x78] sm:$0xff]
  %v54 = vld [vmem:[%s7] sm:$0xff]
  %v55 = vld [vmem:[%s7 + $0x8] sm:$0xff]
  %v56 = vld [vmem:[%s7 + $0x10] sm:$0xff]
  %v57 = vld [vmem:[%s7 + $0x18] sm:$0xff]
  %vm58 = vcmask 261120
  %v60 = vsel %vm58, %v38, 0
  %v63 = vsel %vm58, %v39, 0
  %v66 = vsel %vm58, %v40, 0
  %v69 = vsel %vm58, %v41, 0
  %v72 = vsel %vm58, %v42, 0
  %v75 = vsel %vm58, %v43, 0
  %v78 = vsel %vm58, %v44, 0
  %v81 = vsel %vm58, %v45, 0
  %v84 = vsel %vm58, %v46, 0
  %v87 = vsel %vm58, %v47, 0
  %v90 = vsel %vm58, %v48, 0
  %v93 = vsel %vm58, %v49, 0
  %v96 = vsel %vm58, %v50, 0
  %v99 = vsel %vm58, %v51, 0
  %v102 = vsel %vm58, %v52, 0
  %v105 = vsel %vm58, %v53, 0
  %107 = vmatpush.msra.mxu0 0.0
  %108 = vmatpush.msra.mxu0 0.0
  %109 = vmatpush.msra.mxu0 0.0
  %110 = vmatpush.msra.mxu0 0.0
  %111 = vmatpush.msra.mxu0 0.0
  %112 = vmatpush.msra.mxu0 0.0
  %113 = vmatpush.msra.mxu0 0.0
  %114 = vmatpush.msra.mxu0 0.0
  %115 = vmatpush.msra.mxu0 0.0
  %116 = vmatpush.msra.mxu0 0.0
  %117 = vmatpush.msra.mxu0 0.0
  %118 = vmatpush.msra.mxu0 0.0
  %119 = vmatpush.msra.mxu0 %v57
  %120 = vmatpush.msra.mxu0 %v56
  %121 = vmatpush.msra.mxu0 %v55
  %122 = vmatpush.msra.mxu0 %v54
  %123 = vmatmul.f32.gmra.mxu0 %v60
  %v124 = vpop.f32.mrf.mxu0
  %v125 = vadd.f32 0.0, %v124
  %126 = vmatmul.f32.gmra.mxu0 %v63
  %v127 = vpop.f32.mrf.mxu0
  %v128 = vadd.f32 0.0, %v127
  %129 = vmatmul.f32.gmra.mxu0 %v66
  %v130 = vpop.f32.mrf.mxu0
  %v131 = vadd.f32 0.0, %v130
  %132 = vmatmul.f32.gmra.mxu0 %v69
  %v133 = vpop.f32.mrf.mxu0
  %v134 = vadd.f32 0.0, %v133
  %135 = vmatmul.f32.gmra.mxu0 %v72
  %v136 = vpop.f32.mrf.mxu0
  %v137 = vadd.f32 0.0, %v136
  %138 = vmatmul.f32.gmra.mxu0 %v75
  %v139 = vpop.f32.mrf.mxu0
  %v140 = vadd.f32 0.0, %v139
  %141 = vmatmul.f32.gmra.mxu0 %v78
  %v142 = vpop.f32.mrf.mxu0
  %v143 = vadd.f32 0.0, %v142
  %144 = vmatmul.f32.gmra.mxu0 %v81
  %v145 = vpop.f32.mrf.mxu0
  %v146 = vadd.f32 0.0, %v145
  %147 = vmatmul.f32.gmra.mxu0 %v84
  %v148 = vpop.f32.mrf.mxu0
  %v149 = vadd.f32 0.0, %v148
  %150 = vmatmul.f32.gmra.mxu0 %v87
  %v151 = vpop.f32.mrf.mxu0
  %v152 = vadd.f32 0.0, %v151
  %153 = vmatmul.f32.gmra.mxu0 %v90
  %v154 = vpop.f32.mrf.mxu0
  %v155 = vadd.f32 0.0, %v154
  %156 = vmatmul.f32.gmra.mxu0 %v93
  %v157 = vpop.f32.mrf.mxu0
  %v158 = vadd.f32 0.0, %v157
  %159 = vmatmul.f32.gmra.mxu0 %v96
  %v160 = vpop.f32.mrf.mxu0
  %v161 = vadd.f32 0.0, %v160
  %162 = vmatmul.f32.gmra.mxu0 %v99
  %v163 = vpop.f32.mrf.mxu0
  %v164 = vadd.f32 0.0, %v163
  %165 = vmatmul.f32.gmra.mxu0 %v102
  %v166 = vpop.f32.mrf.mxu0
  %v167 = vadd.f32 0.0, %v166
  %168 = vmatmul.f32.gmra.mxu0 %v105
  %v169 = vpop.f32.mrf.mxu0
  %v170 = vadd.f32 0.0, %v169
  %171 = vdwg.mxu0
  %v172 = vld [vmem:[%s1] sm:$0xff]
  %v173 = vld [vmem:[%s1 + $0x8] sm:$0xff]
  %v174 = vld [vmem:[%s1 + $0x10] sm:$0xff]
  %v175 = vld [vmem:[%s1 + $0x18] sm:$0xff]
  %v176 = vld [vmem:[%s4] sm:$0x1]
  %v178 = vperm.slane %v176, 0
  %180 = vmatpush.msra.mxu0 0.0
  %181 = vmatpush.msra.mxu0 0.0
  %182 = vmatpush.msra.mxu0 0.0
  %183 = vmatpush.msra.mxu0 0.0
  %184 = vmatpush.msra.mxu0 0.0
  %185 = vmatpush.msra.mxu0 0.0
  %186 = vmatpush.msra.mxu0 0.0
  %187 = vmatpush.msra.mxu0 0.0
  %188 = vmatpush.msra.mxu0 0.0
  %189 = vmatpush.msra.mxu0 0.0
  %190 = vmatpush.msra.mxu0 0.0
  %191 = vmatpush.msra.mxu0 0.0
  %192 = vmatpush.msra.mxu0 %v175
  %193 = vmatpush.msra.mxu0 %v174
  %194 = vmatpush.msra.mxu0 %v173
  %195 = vmatpush.msra.mxu0 %v172
  %196 = vmatmul.f32.gmra.mxu0 %v60
  %v197 = vpop.f32.mrf.mxu0
  %v198 = vadd.f32 %v178, %v197
  %199 = vmatmul.f32.gmra.mxu0 %v63
  %v200 = vpop.f32.mrf.mxu0
  %v201 = vadd.f32 %v178, %v200
  %202 = vmatmul.f32.gmra.mxu0 %v66
  %v203 = vpop.f32.mrf.mxu0
  %v204 = vadd.f32 %v178, %v203
  %205 = vmatmul.f32.gmra.mxu0 %v69
  %v206 = vpop.f32.mrf.mxu0
  %v207 = vadd.f32 %v178, %v206
  %208 = vmatmul.f32.gmra.mxu0 %v72
  %v209 = vpop.f32.mrf.mxu0
  %v210 = vadd.f32 %v178, %v209
  %211 = vmatmul.f32.gmra.mxu0 %v75
  %v212 = vpop.f32.mrf.mxu0
  %v213 = vadd.f32 %v178, %v212
  %214 = vmatmul.f32.gmra.mxu0 %v78
  %v215 = vpop.f32.mrf.mxu0
  %v216 = vadd.f32 %v178, %v215
  %217 = vmatmul.f32.gmra.mxu0 %v81
  %v218 = vpop.f32.mrf.mxu0
  %v219 = vadd.f32 %v178, %v218
  %220 = vmatmul.f32.gmra.mxu0 %v84
  %v221 = vpop.f32.mrf.mxu0
  %v222 = vadd.f32 %v178, %v221
  %223 = vmatmul.f32.gmra.mxu0 %v87
  %v224 = vpop.f32.mrf.mxu0
  %v225 = vadd.f32 %v178, %v224
  %226 = vmatmul.f32.gmra.mxu0 %v90
  %v227 = vpop.f32.mrf.mxu0
  %v228 = vadd.f32 %v178, %v227
  %229 = vmatmul.f32.gmra.mxu0 %v93
  %v230 = vpop.f32.mrf.mxu0
  %v231 = vadd.f32 %v178, %v230
  %232 = vmatmul.f32.gmra.mxu0 %v96
  %v233 = vpop.f32.mrf.mxu0
  %v234 = vadd.f32 %v178, %v233
  %235 = vmatmul.f32.gmra.mxu0 %v99
  %v236 = vpop.f32.mrf.mxu0
  %v237 = vadd.f32 %v178, %v236
  %238 = vmatmul.f32.gmra.mxu0 %v102
  %v239 = vpop.f32.mrf.mxu0
  %v240 = vadd.f32 %v178, %v239
  %241 = vmatmul.f32.gmra.mxu0 %v105
  %v242 = vpop.f32.mrf.mxu0
  %v243 = vadd.f32 %v178, %v242
  %244 = vdwg.mxu0
  %v245 = vld [vmem:[%s8] sm:$0xff]
  %vm246 = vcmask 64512
  %v248 = vsel %vm246, %v125, 0
  %v251 = vsel %vm246, %v128, 0
  %v254 = vsel %vm246, %v131, 0
  %v257 = vsel %vm246, %v134, 0
  %v260 = vsel %vm246, %v137, 0
  %v263 = vsel %vm246, %v140, 0
  %v266 = vsel %vm246, %v143, 0
  %v269 = vsel %vm246, %v146, 0
  %v272 = vsel %vm246, %v149, 0
  %v275 = vsel %vm246, %v152, 0
  %v278 = vsel %vm246, %v155, 0
  %v281 = vsel %vm246, %v158, 0
  %v284 = vsel %vm246, %v161, 0
  %v287 = vsel %vm246, %v164, 0
  %v290 = vsel %vm246, %v167, 0
  %v293 = vsel %vm246, %v170, 0
  %295 = vmatpush.msra.mxu0 0.0
  %296 = vmatpush.msra.mxu0 0.0
  %297 = vmatpush.msra.mxu0 0.0
  %298 = vmatpush.msra.mxu0 0.0
  %299 = vmatpush.msra.mxu0 0.0
  %300 = vmatpush.msra.mxu0 0.0
  %301 = vmatpush.msra.mxu0 0.0
  %302 = vmatpush.msra.mxu0 0.0
  %303 = vmatpush.msra.mxu0 0.0
  %304 = vmatpush.msra.mxu0 0.0
  %305 = vmatpush.msra.mxu0 0.0
  %306 = vmatpush.msra.mxu0 0.0
  %307 = vmatpush.msra.mxu0 0.0
  %308 = vmatpush.msra.mxu0 0.0
  %309 = vmatpush.msra.mxu0 0.0
  %310 = vmatpush.msra.mxu0 %v245
  %311 = vmatmul.f32.gmra.mxu0 %v248
  %v312 = vpop.f32.mrf.mxu0
  %v313 = vadd.f32 0.0, %v312
  %314 = vmatmul.f32.gmra.mxu0 %v251
  %v315 = vpop.f32.mrf.mxu0
  %v316 = vadd.f32 0.0, %v315
  %317 = vmatmul.f32.gmra.mxu0 %v254
  %v318 = vpop.f32.mrf.mxu0
  %v319 = vadd.f32 0.0, %v318
  %320 = vmatmul.f32.gmra.mxu0 %v257
  %v321 = vpop.f32.mrf.mxu0
  %v322 = vadd.f32 0.0, %v321
  %323 = vmatmul.f32.gmra.mxu0 %v260
  %v324 = vpop.f32.mrf.mxu0
  %v325 = vadd.f32 0.0, %v324
  %326 = vmatmul.f32.gmra.mxu0 %v263
  %v327 = vpop.f32.mrf.mxu0
  %v328 = vadd.f32 0.0, %v327
  %329 = vmatmul.f32.gmra.mxu0 %v266
  %v330 = vpop.f32.mrf.mxu0
  %v331 = vadd.f32 0.0, %v330
  %332 = vmatmul.f32.gmra.mxu0 %v269
  %v333 = vpop.f32.mrf.mxu0
  %v334 = vadd.f32 0.0, %v333
  %335 = vmatmul.f32.gmra.mxu0 %v272
  %v336 = vpop.f32.mrf.mxu0
  %v337 = vadd.f32 0.0, %v336
  %338 = vmatmul.f32.gmra.mxu0 %v275
  %v339 = vpop.f32.mrf.mxu0
  %v340 = vadd.f32 0.0, %v339
  %341 = vmatmul.f32.gmra.mxu0 %v278
  %v342 = vpop.f32.mrf.mxu0
  %v343 = vadd.f32 0.0, %v342
  %344 = vmatmul.f32.gmra.mxu0 %v281
  %v345 = vpop.f32.mrf.mxu0
  %v346 = vadd.f32 0.0, %v345
  %347 = vmatmul.f32.gmra.mxu0 %v284
  %v348 = vpop.f32.mrf.mxu0
  %v349 = vadd.f32 0.0, %v348
  %350 = vmatmul.f32.gmra.mxu0 %v287
  %v351 = vpop.f32.mrf.mxu0
  %v352 = vadd.f32 0.0, %v351
  %353 = vmatmul.f32.gmra.mxu0 %v290
  %v354 = vpop.f32.mrf.mxu0
  %v355 = vadd.f32 0.0, %v354
  %356 = vmatmul.f32.gmra.mxu0 %v293
  %v357 = vpop.f32.mrf.mxu0
  %v358 = vadd.f32 0.0, %v357
  %359 = vdwg.mxu0
  %v360 = vadd.f32 %v198, %v313
  %v361 = vadd.f32 %v201, %v316
  %v362 = vadd.f32 %v204, %v319
  %v363 = vadd.f32 %v207, %v322
  %v364 = vadd.f32 %v210, %v325
  %v365 = vadd.f32 %v213, %v328
  %v366 = vadd.f32 %v216, %v331
  %v367 = vadd.f32 %v219, %v334
  %v368 = vadd.f32 %v222, %v337
  %v369 = vadd.f32 %v225, %v340
  %v370 = vadd.f32 %v228, %v343
  %v371 = vadd.f32 %v231, %v346
  %v372 = vadd.f32 %v234, %v349
  %v373 = vadd.f32 %v237, %v352
  %v374 = vadd.f32 %v240, %v355
  %v375 = vadd.f32 %v243, %v358
  %376 = vst.msk [vmem:[%s10] sm:$0xff] %vm58, %v360
  %377 = vst.msk [vmem:[%s10 + $0x8] sm:$0xff] %vm58, %v361
  %378 = vst.msk [vmem:[%s10 + $0x10] sm:$0xff] %vm58, %v362
  %379 = vst.msk [vmem:[%s10 + $0x18] sm:$0xff] %vm58, %v363
  %380 = vst.msk [vmem:[%s10 + $0x20] sm:$0xff] %vm58, %v364
  %381 = vst.msk [vmem:[%s10 + $0x28] sm:$0xff] %vm58, %v365
  %382 = vst.msk [vmem:[%s10 + $0x30] sm:$0xff] %vm58, %v366
  %383 = vst.msk [vmem:[%s10 + $0x38] sm:$0xff] %vm58, %v367
  %384 = vst.msk [vmem:[%s10 + $0x40] sm:$0xff] %vm58, %v368
  %385 = vst.msk [vmem:[%s10 + $0x48] sm:$0xff] %vm58, %v369
  %386 = vst.msk [vmem:[%s10 + $0x50] sm:$0xff] %vm58, %v370
  %387 = vst.msk [vmem:[%s10 + $0x58] sm:$0xff] %vm58, %v371
  %388 = vst.msk [vmem:[%s10 + $0x60] sm:$0xff] %vm58, %v372
  %389 = vst.msk [vmem:[%s10 + $0x68] sm:$0xff] %vm58, %v373
  %390 = vst.msk [vmem:[%s10 + $0x70] sm:$0xff] %vm58, %v374
  %391 = vst.msk [vmem:[%s10 + $0x78] sm:$0xff] %vm58, %v375
  %v392 = vld [vmem:[%s2] sm:$0xff]
  %v393 = vld [vmem:[%s2 + $0x8] sm:$0xff]
  %v394 = vld [vmem:[%s2 + $0x10] sm:$0xff]
  %v395 = vld [vmem:[%s2 + $0x18] sm:$0xff]
  %v396 = vld [vmem:[%s5] sm:$0x1]
  %v398 = vperm.slane %v396, 0
  %400 = vmatpush.msra.mxu0 0.0
  %401 = vmatpush.msra.mxu0 0.0
  %402 = vmatpush.msra.mxu0 0.0
  %403 = vmatpush.msra.mxu0 0.0
  %404 = vmatpush.msra.mxu0 0.0
  %405 = vmatpush.msra.mxu0 0.0
  %406 = vmatpush.msra.mxu0 0.0
  %407 = vmatpush.msra.mxu0 0.0
  %408 = vmatpush.msra.mxu0 0.0
  %409 = vmatpush.msra.mxu0 0.0
  %410 = vmatpush.msra.mxu0 0.0
  %411 = vmatpush.msra.mxu0 0.0
  %412 = vmatpush.msra.mxu0 %v395
  %413 = vmatpush.msra.mxu0 %v394
  %414 = vmatpush.msra.mxu0 %v393
  %415 = vmatpush.msra.mxu0 %v392
  %416 = vmatmul.f32.gmra.mxu0 %v60
  %v417 = vpop.f32.mrf.mxu0
  %v418 = vadd.f32 %v398, %v417
  %419 = vmatmul.f32.gmra.mxu0 %v63
  %v420 = vpop.f32.mrf.mxu0
  %v421 = vadd.f32 %v398, %v420
  %422 = vmatmul.f32.gmra.mxu0 %v66
  %v423 = vpop.f32.mrf.mxu0
  %v424 = vadd.f32 %v398, %v423
  %425 = vmatmul.f32.gmra.mxu0 %v69
  %v426 = vpop.f32.mrf.mxu0
  %v427 = vadd.f32 %v398, %v426
  %428 = vmatmul.f32.gmra.mxu0 %v72
  %v429 = vpop.f32.mrf.mxu0
  %v430 = vadd.f32 %v398, %v429
  %431 = vmatmul.f32.gmra.mxu0 %v75
  %v432 = vpop.f32.mrf.mxu0
  %v433 = vadd.f32 %v398, %v432
  %434 = vmatmul.f32.gmra.mxu0 %v78
  %v435 = vpop.f32.mrf.mxu0
  %v436 = vadd.f32 %v398, %v435
  %437 = vmatmul.f32.gmra.mxu0 %v81
  %v438 = vpop.f32.mrf.mxu0
  %v439 = vadd.f32 %v398, %v438
  %440 = vmatmul.f32.gmra.mxu0 %v84
  %v441 = vpop.f32.mrf.mxu0
  %v442 = vadd.f32 %v398, %v441
  %443 = vmatmul.f32.gmra.mxu0 %v87
  %v444 = vpop.f32.mrf.mxu0
  %v445 = vadd.f32 %v398, %v444
  %446 = vmatmul.f32.gmra.mxu0 %v90
  %v447 = vpop.f32.mrf.mxu0
  %v448 = vadd.f32 %v398, %v447
  %449 = vmatmul.f32.gmra.mxu0 %v93
  %v450 = vpop.f32.mrf.mxu0
  %v451 = vadd.f32 %v398, %v450
  %452 = vmatmul.f32.gmra.mxu0 %v96
  %v453 = vpop.f32.mrf.mxu0
  %v454 = vadd.f32 %v398, %v453
  %455 = vmatmul.f32.gmra.mxu0 %v99
  %v456 = vpop.f32.mrf.mxu0
  %v457 = vadd.f32 %v398, %v456
  %458 = vmatmul.f32.gmra.mxu0 %v102
  %v459 = vpop.f32.mrf.mxu0
  %v460 = vadd.f32 %v398, %v459
  %461 = vmatmul.f32.gmra.mxu0 %v105
  %v462 = vpop.f32.mrf.mxu0
  %v463 = vadd.f32 %v398, %v462
  %464 = vdwg.mxu0
  %465 = vst.msk [vmem:[%s11] sm:$0xff] %vm58, %v418
  %466 = vst.msk [vmem:[%s11 + $0x8] sm:$0xff] %vm58, %v421
  %467 = vst.msk [vmem:[%s11 + $0x10] sm:$0xff] %vm58, %v424
  %468 = vst.msk [vmem:[%s11 + $0x18] sm:$0xff] %vm58, %v427
  %469 = vst.msk [vmem:[%s11 + $0x20] sm:$0xff] %vm58, %v430
  %470 = vst.msk [vmem:[%s11 + $0x28] sm:$0xff] %vm58, %v433
  %471 = vst.msk [vmem:[%s11 + $0x30] sm:$0xff] %vm58, %v436
  %472 = vst.msk [vmem:[%s11 + $0x38] sm:$0xff] %vm58, %v439
  %473 = vst.msk [vmem:[%s11 + $0x40] sm:$0xff] %vm58, %v442
  %474 = vst.msk [vmem:[%s11 + $0x48] sm:$0xff] %vm58, %v445
  %475 = vst.msk [vmem:[%s11 + $0x50] sm:$0xff] %vm58, %v448
  %476 = vst.msk [vmem:[%s11 + $0x58] sm:$0xff] %vm58, %v451
  %477 = vst.msk [vmem:[%s11 + $0x60] sm:$0xff] %vm58, %v454
  %478 = vst.msk [vmem:[%s11 + $0x68] sm:$0xff] %vm58, %v457
  %479 = vst.msk [vmem:[%s11 + $0x70] sm:$0xff] %vm58, %v460
  %480 = vst.msk [vmem:[%s11 + $0x78] sm:$0xff] %vm58, %v463
  %v481 = vld [vmem:[%s3] sm:$0xff]
  %v482 = vld [vmem:[%s3 + $0x8] sm:$0xff]
  %v483 = vld [vmem:[%s3 + $0x10] sm:$0xff]
  %v484 = vld [vmem:[%s3 + $0x18] sm:$0xff]
  %v485 = vld [vmem:[%s6] sm:$0x1]
  %v487 = vperm.slane %v485, 0
  %489 = vmatpush.msra.mxu0 0.0
  %490 = vmatpush.msra.mxu0 0.0
  %491 = vmatpush.msra.mxu0 0.0
  %492 = vmatpush.msra.mxu0 0.0
  %493 = vmatpush.msra.mxu0 0.0
  %494 = vmatpush.msra.mxu0 0.0
  %495 = vmatpush.msra.mxu0 0.0
  %496 = vmatpush.msra.mxu0 0.0
  %497 = vmatpush.msra.mxu0 0.0
  %498 = vmatpush.msra.mxu0 0.0
  %499 = vmatpush.msra.mxu0 0.0
  %500 = vmatpush.msra.mxu0 0.0
  %501 = vmatpush.msra.mxu0 %v484
  %502 = vmatpush.msra.mxu0 %v483
  %503 = vmatpush.msra.mxu0 %v482
  %504 = vmatpush.msra.mxu0 %v481
  %505 = vmatmul.f32.gmra.mxu0 %v60
  %v506 = vpop.f32.mrf.mxu0
  %v507 = vadd.f32 %v487, %v506
  %508 = vmatmul.f32.gmra.mxu0 %v63
  %v509 = vpop.f32.mrf.mxu0
  %v510 = vadd.f32 %v487, %v509
  %511 = vmatmul.f32.gmra.mxu0 %v66
  %v512 = vpop.f32.mrf.mxu0
  %v513 = vadd.f32 %v487, %v512
  %514 = vmatmul.f32.gmra.mxu0 %v69
  %v515 = vpop.f32.mrf.mxu0
  %v516 = vadd.f32 %v487, %v515
  %517 = vmatmul.f32.gmra.mxu0 %v72
  %v518 = vpop.f32.mrf.mxu0
  %v519 = vadd.f32 %v487, %v518
  %520 = vmatmul.f32.gmra.mxu0 %v75
  %v521 = vpop.f32.mrf.mxu0
  %v522 = vadd.f32 %v487, %v521
  %523 = vmatmul.f32.gmra.mxu0 %v78
  %v524 = vpop.f32.mrf.mxu0
  %v525 = vadd.f32 %v487, %v524
  %526 = vmatmul.f32.gmra.mxu0 %v81
  %v527 = vpop.f32.mrf.mxu0
  %v528 = vadd.f32 %v487, %v527
  %529 = vmatmul.f32.gmra.mxu0 %v84
  %v530 = vpop.f32.mrf.mxu0
  %v531 = vadd.f32 %v487, %v530
  %532 = vmatmul.f32.gmra.mxu0 %v87
  %v533 = vpop.f32.mrf.mxu0
  %v534 = vadd.f32 %v487, %v533
  %535 = vmatmul.f32.gmra.mxu0 %v90
  %v536 = vpop.f32.mrf.mxu0
  %v537 = vadd.f32 %v487, %v536
  %538 = vmatmul.f32.gmra.mxu0 %v93
  %v539 = vpop.f32.mrf.mxu0
  %v540 = vadd.f32 %v487, %v539
  %541 = vmatmul.f32.gmra.mxu0 %v96
  %v542 = vpop.f32.mrf.mxu0
  %v543 = vadd.f32 %v487, %v542
  %544 = vmatmul.f32.gmra.mxu0 %v99
  %v545 = vpop.f32.mrf.mxu0
  %v546 = vadd.f32 %v487, %v545
  %547 = vmatmul.f32.gmra.mxu0 %v102
  %v548 = vpop.f32.mrf.mxu0
  %v549 = vadd.f32 %v487, %v548
  %550 = vmatmul.f32.gmra.mxu0 %v105
  %v551 = vpop.f32.mrf.mxu0
  %v552 = vadd.f32 %v487, %v551
  %553 = vdwg.mxu0
  %v554 = vld [vmem:[%s9] sm:$0xff]
  %555 = vmatpush.msra.mxu0 0.0
  %556 = vmatpush.msra.mxu0 0.0
  %557 = vmatpush.msra.mxu0 0.0
  %558 = vmatpush.msra.mxu0 0.0
  %559 = vmatpush.msra.mxu0 0.0
  %560 = vmatpush.msra.mxu0 0.0
  %561 = vmatpush.msra.mxu0 0.0
  %562 = vmatpush.msra.mxu0 0.0
  %563 = vmatpush.msra.mxu0 0.0
  %564 = vmatpush.msra.mxu0 0.0
  %565 = vmatpush.msra.mxu0 0.0
  %566 = vmatpush.msra.mxu0 0.0
  %567 = vmatpush.msra.mxu0 0.0
  %568 = vmatpush.msra.mxu0 0.0
  %569 = vmatpush.msra.mxu0 0.0
  %570 = vmatpush.msra.mxu0 %v554
  %571 = vmatmul.f32.gmra.mxu0 %v248
  %v572 = vpop.f32.mrf.mxu0
  %v573 = vadd.f32 0.0, %v572
  %574 = vmatmul.f32.gmra.mxu0 %v251
  %v575 = vpop.f32.mrf.mxu0
  %v576 = vadd.f32 0.0, %v575
  %577 = vmatmul.f32.gmra.mxu0 %v254
  %v578 = vpop.f32.mrf.mxu0
  %v579 = vadd.f32 0.0, %v578
  %580 = vmatmul.f32.gmra.mxu0 %v257
  %v581 = vpop.f32.mrf.mxu0
  %v582 = vadd.f32 0.0, %v581
  %583 = vmatmul.f32.gmra.mxu0 %v260
  %v584 = vpop.f32.mrf.mxu0
  %v585 = vadd.f32 0.0, %v584
  %586 = vmatmul.f32.gmra.mxu0 %v263
  %v587 = vpop.f32.mrf.mxu0
  %v588 = vadd.f32 0.0, %v587
  %589 = vmatmul.f32.gmra.mxu0 %v266
  %v590 = vpop.f32.mrf.mxu0
  %v591 = vadd.f32 0.0, %v590
  %592 = vmatmul.f32.gmra.mxu0 %v269
  %v593 = vpop.f32.mrf.mxu0
  %v594 = vadd.f32 0.0, %v593
  %595 = vmatmul.f32.gmra.mxu0 %v272
  %v596 = vpop.f32.mrf.mxu0
  %v597 = vadd.f32 0.0, %v596
  %598 = vmatmul.f32.gmra.mxu0 %v275
  %v599 = vpop.f32.mrf.mxu0
  %v600 = vadd.f32 0.0, %v599
  %601 = vmatmul.f32.gmra.mxu0 %v278
  %v602 = vpop.f32.mrf.mxu0
  %v603 = vadd.f32 0.0, %v602
  %604 = vmatmul.f32.gmra.mxu0 %v281
  %v605 = vpop.f32.mrf.mxu0
  %v606 = vadd.f32 0.0, %v605
  %607 = vmatmul.f32.gmra.mxu0 %v284
  %v608 = vpop.f32.mrf.mxu0
  %v609 = vadd.f32 0.0, %v608
  %610 = vmatmul.f32.gmra.mxu0 %v287
  %v611 = vpop.f32.mrf.mxu0
  %v612 = vadd.f32 0.0, %v611
  %613 = vmatmul.f32.gmra.mxu0 %v290
  %v614 = vpop.f32.mrf.mxu0
  %v615 = vadd.f32 0.0, %v614
  %616 = vmatmul.f32.gmra.mxu0 %v293
  %v617 = vpop.f32.mrf.mxu0
  %v618 = vadd.f32 0.0, %v617
  %619 = vdwg.mxu0
  %v620 = vadd.f32 %v507, %v573
  %v621 = vadd.f32 %v510, %v576
  %v622 = vadd.f32 %v513, %v579
  %v623 = vadd.f32 %v516, %v582
  %v624 = vadd.f32 %v519, %v585
  %v625 = vadd.f32 %v522, %v588
  %v626 = vadd.f32 %v525, %v591
  %v627 = vadd.f32 %v528, %v594
  %v628 = vadd.f32 %v531, %v597
  %v629 = vadd.f32 %v534, %v600
  %v630 = vadd.f32 %v537, %v603
  %v631 = vadd.f32 %v540, %v606
  %v632 = vadd.f32 %v543, %v609
  %v633 = vadd.f32 %v546, %v612
  %v634 = vadd.f32 %v549, %v615
  %v635 = vadd.f32 %v552, %v618
  %636 = vst.msk [vmem:[%s12] sm:$0xff] %vm58, %v620
  %637 = vst.msk [vmem:[%s12 + $0x8] sm:$0xff] %vm58, %v621
  %638 = vst.msk [vmem:[%s12 + $0x10] sm:$0xff] %vm58, %v622
  %639 = vst.msk [vmem:[%s12 + $0x18] sm:$0xff] %vm58, %v623
  %640 = vst.msk [vmem:[%s12 + $0x20] sm:$0xff] %vm58, %v624
  %641 = vst.msk [vmem:[%s12 + $0x28] sm:$0xff] %vm58, %v625
  %642 = vst.msk [vmem:[%s12 + $0x30] sm:$0xff] %vm58, %v626
  %643 = vst.msk [vmem:[%s12 + $0x38] sm:$0xff] %vm58, %v627
  %644 = vst.msk [vmem:[%s12 + $0x40] sm:$0xff] %vm58, %v628
  %645 = vst.msk [vmem:[%s12 + $0x48] sm:$0xff] %vm58, %v629
  %646 = vst.msk [vmem:[%s12 + $0x50] sm:$0xff] %vm58, %v630
  %647 = vst.msk [vmem:[%s12 + $0x58] sm:$0xff] %vm58, %v631
  %648 = vst.msk [vmem:[%s12 + $0x60] sm:$0xff] %vm58, %v632
  %649 = vst.msk [vmem:[%s12 + $0x68] sm:$0xff] %vm58, %v633
  %650 = vst.msk [vmem:[%s12 + $0x70] sm:$0xff] %vm58, %v634
  %651 = vst.msk [vmem:[%s12 + $0x78] sm:$0xff] %vm58, %v635
  // Predicated region
  $region42: #{tpu_custom_call.1} parent=0 // pred_check
    _
  $region43: #{tpu_custom_call.1} parent=0 // pred_check_branch
    %653 = sbr.rel (0) target = $region45
  $region44: #{tpu_custom_call.1} parent=0 // pred_region
    _
  $region45: #{tpu_custom_call.1} parent=0 // pred_fallthru
    _
  // Predicated region
  $region46: #{tpu_custom_call.1} parent=0 // pred_check
    _
  $region47: #{tpu_custom_call.1} parent=0 // pred_check_branch
    %655 = sbr.rel (0) target = $region49
  $region48: #{tpu_custom_call.1} parent=0 // pred_region
    _
  $region49: #{tpu_custom_call.1} parent=0 // pred_fallthru
    _
  // Predicated region
  $region50: #{tpu_custom_call.1} parent=0 // pred_check
    _
  $region51: #{tpu_custom_call.1} parent=0 // pred_check_branch
    %657 = sbr.rel (0) target = $region53
  $region52: #{tpu_custom_call.1} parent=0 // pred_region
    _
  $region53: #{tpu_custom_call.1} parent=0 // pred_fallthru
    _
  // Predicated region
  $region54: #{tpu_custom_call.1} parent=0 // pred_check
    _
  $region55: #{tpu_custom_call.1} parent=0 // pred_check_branch
    %659 = sbr.rel (0) target = $region57
  $region56: #{tpu_custom_call.1} parent=0 // pred_region
    _
  $region57: #{tpu_custom_call.1} parent=0 // pred_fallthru
    _
  // Predicated region
  $region58: #{tpu_custom_call.1} parent=0 // pred_check
    _
  $region59: #{tpu_custom_call.1} parent=0 // pred_check_branch
    %661 = sbr.rel (0) target = $region61
  $region60: #{tpu_custom_call.1} parent=0 // pred_region
    _
  $region61: #{tpu_custom_call.1} parent=0 // pred_fallthru
    _
  // Predicated region
  $region62: #{tpu_custom_call.1} parent=0 // pred_check
    _
  $region63: #{tpu_custom_call.1} parent=0 // pred_check_branch
    %663 = sbr.rel (0) target = $region65
  $region64: #{tpu_custom_call.1} parent=0 // pred_region
    _
  $region65: #{tpu_custom_call.1} parent=0 // pred_fallthru
    _

</llo_original>
